<compile_context>
chip_gen: v7x
topology: tpu7x:2x2x1
jax: 0.10.0
libtpu: 0.0.40
codegen_flags: <defaults>
</compile_context>

<pallas_src>
import functools

import jax
import jax.numpy as jnp
from jax.experimental import pallas as pl
from jax.experimental.pallas import tpu as pltpu


def _token_se_kernel(x_ref, w1t_ref, w2t_ref, o_ref, *, inv_n, use_residual):
    # Block shapes: x/o (TB, T, N); w1t (T, Tr); w2t (Tr, T)  [weights resident]
    x = x_ref[...]                                            # native dtype, no upcast

    # Squeeze: per-token mean over the feature axis, accumulated in f32.
    s = jnp.sum(x, axis=2, dtype=jnp.float32) * inv_n         # [TB, T] f32

    # Excitation MLP: relu(s @ W1^T) @ W2^T, sigmoid.  (MXU, f32 accumulate)
    h = jnp.dot(s, w1t_ref[...].astype(jnp.float32),
                preferred_element_type=jnp.float32)           # [TB, Tr]
    h = jnp.maximum(h, 0.0)
    w = jnp.dot(h, w2t_ref[...].astype(jnp.float32),
                preferred_element_type=jnp.float32)           # [TB, T]
    w = jax.nn.sigmoid(w)

    # Residual fused into the scale: x * w + x == x * (w + 1).
    scale = w + 1.0 if use_residual else w                    # [TB, T] f32

    # Final scale in the input dtype: avoids a second full-tile f32 temporary.
    o_ref[...] = (x * scale.astype(x.dtype)[:, :, None]).astype(o_ref.dtype)


def _vmem_capacity_bytes():
    """Physical per-core VMEM; conservative 64 MiB fallback (v7x per-TC)."""
    try:
        info = pltpu.get_tpu_info()
        return int(getattr(info, "vmem_capacity_bytes", 64 << 20))
    except Exception:
        return 64 << 20


def _pick_block_b(B, T, N, itemsize, budget_bytes):
    """Largest batch-block whose double-buffered in+out x tiles fit the budget,
    capped so the grid has >= 2 steps (pipelining + v7x dual-TensorCore)."""
    per_batch = T * N * itemsize * 2 * 2          # in + out, x2 double buffering
    max_fit = max(1, budget_bytes // per_batch)
    if B >= 2:
        max_fit = min(max_fit, (B + 1) // 2)      # guarantee >= 2 grid steps
    max_fit = min(max_fit, B)
    # Prefer an exact divisor of B (no ragged last block) unless it costs >~2x steps.
    for cand in range(max_fit, max(1, max_fit // 2), -1):
        if B % cand == 0:
            return cand
    return max_fit                                 # ragged last block via cdiv grid


def token_se_forward(x, w1, w2, *, use_residual=True, block_b=None):
    """
    x  : [B, T, N]     (B batch, T tokens, N features per token)
    w1 : [T//r, T]     PyTorch nn.Linear weight of the first FC (bias=False)
    w2 : [T, T//r]     PyTorch nn.Linear weight of the second FC (bias=False)
    returns: [B, T, N]
    """
    B, T, N = x.shape
    Tr = w1.shape[0]
    assert w1.shape == (Tr, T) and w2.shape == (T, Tr)

    itemsize = jnp.dtype(x.dtype).itemsize
    vmem_phys = _vmem_capacity_bytes()
    # Budget for the 4 double-buffered in/out x blocks:
    #   v7x (64 MiB/TC) -> ~21 MiB; v5e/v6e (128 MiB) -> capped at 32 MiB.
    block_budget = min(vmem_phys // 3, 32 << 20)

    if block_b is None:
        block_b = _pick_block_b(B, T, N, itemsize, block_budget)
    block_b = max(1, min(block_b, B))
    grid_b = pl.cdiv(B, block_b)

    block_bytes = block_b * T * N * itemsize
    vmem_limit = int(min(vmem_phys - (8 << 20),
                         max(32 << 20, 4 * block_bytes + (8 << 20))))

    # Pre-transpose the tiny SE weights once (T*Tr elements) so the kernel runs
    # plain row-major matmuls; the big tensor x needs no layout change at all.
    w1t = jnp.transpose(w1)          # [T, Tr]
    w2t = jnp.transpose(w2)          # [Tr, T]

    kernel = functools.partial(_token_se_kernel, inv_n=float(1.0 / N),
                               use_residual=use_residual)

    cost = pl.CostEstimate(
        flops=int(2 * B * T * N + 4 * B * T * Tr),
        transcendentals=int(B * T),
        bytes_accessed=int(2 * B * T * N * itemsize
                           + 2 * T * Tr * jnp.dtype(w1.dtype).itemsize),
    )

    return pl.pallas_call(
        kernel,
        out_shape=jax.ShapeDtypeStruct((B, T, N), x.dtype),
        grid_spec=pltpu.PrefetchScalarGridSpec(
            num_scalar_prefetch=0,
            grid=(grid_b,),
            in_specs=[
                pl.BlockSpec((block_b, T, N), lambda i: (i, 0, 0)),  # x (streamed)
                pl.BlockSpec((T, Tr), lambda i: (0, 0)),             # W1^T (resident)
                pl.BlockSpec((Tr, T), lambda i: (0, 0)),             # W2^T (resident)
            ],
            out_specs=pl.BlockSpec((block_b, T, N), lambda i: (i, 0, 0)),
        ),
        compiler_params=pltpu.CompilerParams(
            dimension_semantics=("parallel",),
            vmem_limit_bytes=vmem_limit),
        cost_estimate=cost,
    )(x, w1t, w2t)


def token_se_reference(x, w1, w2, use_residual=True):
    """Pure-JAX reference of the PyTorch TokenSE forward."""
    s = jnp.mean(x, axis=2)                       # [B, T]
    h = jax.nn.relu(s @ w1.T)                     # [B, T//r]
    w = jax.nn.sigmoid(h @ w2.T)                  # [B, T]
    w = w[:, :, None]                             # [B, T, 1]
    return x * w + x if use_residual else x * w


if __name__ == "__main__":
    # Small shapes consistent with the module: B batch, T tokens (token_dim),
    # N features per token, reduction=4.  N chosen lane-dense (multiple of 128).
    B, T, N, reduction = 2, 16, 128, 4
    Tr = T // reduction

    key = jax.random.PRNGKey(0)
    kx, k1, k2 = jax.random.split(key, 3)

    x = jax.random.normal(kx, (B, T, N), dtype=jnp.float32)

    # PyTorch-default Linear init: U(-1/sqrt(fan_in), 1/sqrt(fan_in)), bias=False.
    b1 = 1.0 / (T ** 0.5)
    b2 = 1.0 / (Tr ** 0.5)
    w1 = jax.random.uniform(k1, (Tr, T), minval=-b1, maxval=b1, dtype=jnp.float32)
    w2 = jax.random.uniform(k2, (T, Tr), minval=-b2, maxval=b2, dtype=jnp.float32)

    out = token_se_forward(x, w1, w2, use_residual=True)
    out = jax.block_until_ready(out)

    ref = token_se_reference(x, w1, w2, use_residual=True)
    assert out.shape == (B, T, N)
    assert jnp.allclose(out, ref, atol=1e-4, rtol=1e-4), "mismatch vs reference"

    print("KERNEL_OK")
</pallas_src>

<mosaic_0001>
module attributes {stable_mosaic.version = 11 : i64} {
  func.func @_token_se_kernel(%arg0: i32, %arg1: memref<1x16x128xf32, #tpu.memory_space<vmem>>, %arg2: memref<16x4xf32, #tpu.memory_space<vmem>>, %arg3: memref<4x16xf32, #tpu.memory_space<vmem>>, %arg4: memref<1x16x128xf32, #tpu.memory_space<vmem>>) attributes {dimension_semantics = [#tpu.dimension_semantics<parallel>], iteration_bounds = array<i64: 2>, scalar_prefetch = 0 : i64, scratch_operands = 0 : i64, tpu.core_type = #tpu.core_type<tc>, window_params = [{transform_indices = @transform_0, window_bounds = array<i64: 1, 16, 128>}, {pipeline_mode = #tpu.pipeline_mode<synchronous>, transform_indices = @transform_1, window_bounds = array<i64: 16, 4>}, {pipeline_mode = #tpu.pipeline_mode<synchronous>, transform_indices = @transform_2, window_bounds = array<i64: 4, 16>}, {transform_indices = @transform_3, window_bounds = array<i64: 1, 16, 128>}]} {
    %c0 = arith.constant 0 : index
    %c0_0 = arith.constant 0 : index
    %c0_1 = arith.constant 0 : index
    %0 = vector.load %arg1[%c0, %c0_0, %c0_1] : memref<1x16x128xf32, #tpu.memory_space<vmem>>, vector<1x16x128xf32>
    %cst = arith.constant dense<0.000000e+00> : vector<1x16xf32>
    %1 = vector.multi_reduction <add>, %0, %cst [2] : vector<1x16x128xf32> to vector<1x16xf32>
    %cst_2 = arith.constant 7.812500e-03 : f32
    %2 = vector.broadcast %cst_2 : f32 to vector<1x16xf32>
    %3 = arith.mulf %1, %2 : vector<1x16xf32>
    %c0_3 = arith.constant 0 : index
    %c0_4 = arith.constant 0 : index
    %4 = vector.load %arg2[%c0_3, %c0_4] : memref<16x4xf32, #tpu.memory_space<vmem>>, vector<16x4xf32>
    %cst_5 = arith.constant dense<0.000000e+00> : vector<1x4xf32>
    %5 = tpu.matmul %3, %4, %cst_5 {dimension_numbers = #tpu.dot_dimension_numbers<[1], [0], [0], [1], [0, 0, 1, 1], [], []>} : vector<1x16xf32>, vector<16x4xf32>, vector<1x4xf32> -> vector<1x4xf32>
    %cst_6 = arith.constant 0.000000e+00 : f32
    %6 = vector.broadcast %cst_6 : f32 to vector<1x4xf32>
    %7 = arith.maximumf %5, %6 : vector<1x4xf32>
    %c0_7 = arith.constant 0 : index
    %c0_8 = arith.constant 0 : index
    %8 = vector.load %arg3[%c0_7, %c0_8] : memref<4x16xf32, #tpu.memory_space<vmem>>, vector<4x16xf32>
    %cst_9 = arith.constant dense<0.000000e+00> : vector<1x16xf32>
    %9 = tpu.matmul %7, %8, %cst_9 {dimension_numbers = #tpu.dot_dimension_numbers<[1], [0], [0], [1], [0, 0, 1, 1], [], []>} : vector<1x4xf32>, vector<4x16xf32>, vector<1x16xf32> -> vector<1x16xf32>
    %10 = arith.negf %9 : vector<1x16xf32>
    %11 = math.exp %10 : vector<1x16xf32>
    %cst_10 = arith.constant 1.000000e+00 : f32
    %12 = vector.broadcast %cst_10 : f32 to vector<1x16xf32>
    %13 = arith.addf %12, %11 : vector<1x16xf32>
    %14 = arith.divf %12, %13 : vector<1x16xf32>
    %cst_11 = arith.constant 1.000000e+00 : f32
    %15 = vector.broadcast %cst_11 : f32 to vector<1x16xf32>
    %16 = arith.addf %14, %15 : vector<1x16xf32>
    %17 = vector.shape_cast %16 : vector<1x16xf32> to vector<1x16x1xf32>
    %18 = vector.broadcast %17 : vector<1x16x1xf32> to vector<1x16x128xf32>
    %19 = arith.mulf %0, %18 : vector<1x16x128xf32>
    %c0_12 = arith.constant 0 : index
    %c0_13 = arith.constant 0 : index
    %c0_14 = arith.constant 0 : index
    %20 = vector.load %arg4[%c0_12, %c0_13, %c0_14] : memref<1x16x128xf32, #tpu.memory_space<vmem>>, vector<1x16x128xf32>
    tpu.vector_store %arg4[%c0_12, %c0_13, %c0_14], %19 {strides = array<i32>} : memref<1x16x128xf32, #tpu.memory_space<vmem>>, vector<1x16x128xf32>,
    return
  }
  func.func @transform_0(%arg0: i32) -> (i32, i32, i32) {
    %c0_i32 = arith.constant 0 : i32
    %c0_i32_0 = arith.constant 0 : i32
    %c0_i32_1 = arith.constant 0 : i32
    return %arg0, %c0_i32, %c0_i32_0 : i32, i32, i32
  }
  func.func @transform_1(%arg0: i32) -> (i32, i32) {
    %c0_i32 = arith.constant 0 : i32
    %c0_i32_0 = arith.constant 0 : i32
    %c0_i32_1 = arith.constant 0 : i32
    return %c0_i32, %c0_i32_0 : i32, i32
  }
  func.func @transform_2(%arg0: i32) -> (i32, i32) {
    %c0_i32 = arith.constant 0 : i32
    %c0_i32_0 = arith.constant 0 : i32
    %c0_i32_1 = arith.constant 0 : i32
    return %c0_i32, %c0_i32_0 : i32, i32
  }
  func.func @transform_3(%arg0: i32) -> (i32, i32, i32) {
    %c0_i32 = arith.constant 0 : i32
    %c0_i32_0 = arith.constant 0 : i32
    %c0_i32_1 = arith.constant 0 : i32
    return %arg0, %c0_i32, %c0_i32_0 : i32, i32, i32
  }
}

</mosaic_0001>

<llo_original>
// kernel: tpu_custom_call.1
$region0: #{tpu_custom_call.1}
  #allocation0 [shape = 'u32[]', space=smem, size = 0x4, offset = 0x4, fixed_abs, tag = 'smem constant byte address 0x4 - core index']
  #allocation1 [shape = 'u32[144,128]{1,0:T(1,128)}', space=vmem, size = 0x12000, scoped, tag = 'internal scratch']
  %s0 = inlined_call_operand.hbm [shape: f32[2,16,128], index: 0, kind: input, shape index: {}]
  %s1 = inlined_call_operand.vmem [shape: f32[16,4], index: 1, kind: input, shape index: {}]
  %s2 = inlined_call_operand.vmem [shape: f32[4,16], index: 2, kind: input, shape index: {}]
  %s3 = inlined_call_operand.hbm [shape: f32[2,16,128], index: 3, kind: output, shape index: {}]
  %s4 = sld [smem:[#allocation0]]
  $region49: #{tpu_custom_call.1} parent=0
    _
  %s6 = ssub.s32 1, %s4
  %s7 = scalar_select 0, %s6, %s4
  $region1: #{tpu_custom_call.1} parent=0
    #allocation2 [shape = 'u8[16384]{0}', space=vmem, size = 0x4000, scoped, tag = 'input window, operand 0']
    #allocation3 [shape = 's32[2]{0}', space=sflag, size = 0x8, scoped, tag = 'scoped memory for tpu_custom_call.1']
    #allocation4 [shape = 's32[2]{0}', space=sflag, size = 0x8, scoped, tag = 'scoped memory for tpu_custom_call.1']
    #allocation5 [shape = 'u8[16384]{0}', space=vmem, size = 0x4000, scoped, tag = 'output window, operand 0']
    %8 = vsyncpa [#allocation3], 0
    %s9 = scalar_lea.sflag [#allocation3], 1
    %10 = vsyncpa %s9, 0
    %11 = vsyncpa [#allocation4], 0
    %s12 = scalar_lea.sflag [#allocation4], 1
    %13 = vsyncpa %s12, 0
    loop: start=0, step=1, limit=4
    $region2: #{tpu_custom_call.1} parent=1 // loop_pre_header
      _
    $region3: #{tpu_custom_call.1} parent=1 // loop_header
      %s15 = sphi 0, %s19
      %p16 = scmp.ge.s32.totalorder %s15, 4
      %s25 = sphi 0, %s27
      %s28 = sphi 0, %s25
      %s29 = sphi 0, %s28
      %s45 = sphi 0, %s29
      %s49 = sphi 0, %s49
      %s51 = sphi 0, %s49
      %s52 = sphi 0, %s51
      %s66 = sphi 0, %s52
      %s70 = sphi 0, %s70
      %s72 = sphi 0, %s70
      %s73 = sphi 0, %s72
      %s87 = sphi 0, %s73
      %s93 = sphi 0, %s95
      %s96 = sphi 0, %s93
      %s97 = sphi 0, %s96
      %s113 = sphi 0, %s97
    $region4: #{tpu_custom_call.1} parent=1 // loop_header_branch
      %18 = sbr.rel (%p16) target = $region8
    $region5: #{tpu_custom_call.1} parent=1 // loop_body
      %s20 = ssub.s32 %s15, 1
      %s21 = ssub.s32 %s15, 2
      %s22 = sadd.s32 %s15, 1
      %s23 = ssub.s32 %s15, %s22
      %p24 = scmp.eq.s32.totalorder %s23, 0
      %s26 = sadd.s32 %s25, 1
      %s27 = scalar_select %p24, %s25, %s26
      %p30 = pneg %p24
      %p31 = scmp.eq.s32.totalorder %s15, 1
      %p32 = por %p30, %p31
      %p33 = scmp.ne.s32.totalorder %s25, %s28
      %p34 = scmp.eq.s32.totalorder %s15, 0
      %p35 = por %p33, %p34
      %p36 = scmp.ne.s32.totalorder %s25, %s28
      %p37 = scmp.eq.s32.totalorder %s20, 1
      %p38 = por %p36, %p37
      %p39 = scmp.ne.s32.totalorder %s28, %s29
      %p40 = scmp.eq.s32.totalorder %s20, 0
      %p41 = por %p39, %p40
      %p42 = scmp.ne.s32.totalorder %s28, %s29
      %p43 = scmp.eq.s32.totalorder %s21, 1
      %p44 = por %p42, %p43
      %p46 = scmp.ne.s32.totalorder %s29, %s45
      %p47 = scmp.eq.s32.totalorder %s21, 0
      %p48 = por %p46, %p47
      %s50 = sadd.s32 %s49, 1
      %p53 = scmp.eq.s32.totalorder %s15, 1
      %p54 = scmp.ne.s32.totalorder %s49, %s51
      %p55 = scmp.eq.s32.totalorder %s15, 0
      %p56 = por %p54, %p55
      %p57 = scmp.ne.s32.totalorder %s49, %s51
      %p58 = scmp.eq.s32.totalorder %s20, 1
      %p59 = por %p57, %p58
      %p60 = scmp.ne.s32.totalorder %s51, %s52
      %p61 = scmp.eq.s32.totalorder %s20, 0
      %p62 = por %p60, %p61
      %p63 = scmp.ne.s32.totalorder %s51, %s52
      %p64 = scmp.eq.s32.totalorder %s21, 1
      %p65 = por %p63, %p64
      %p67 = scmp.ne.s32.totalorder %s52, %s66
      %p68 = scmp.eq.s32.totalorder %s21, 0
      %p69 = por %p67, %p68
      %s71 = sadd.s32 %s70, 1
      %p74 = scmp.eq.s32.totalorder %s15, 1
      %p75 = scmp.ne.s32.totalorder %s70, %s72
      %p76 = scmp.eq.s32.totalorder %s15, 0
      %p77 = por %p75, %p76
      %p78 = scmp.ne.s32.totalorder %s70, %s72
      %p79 = scmp.eq.s32.totalorder %s20, 1
      %p80 = por %p78, %p79
      %p81 = scmp.ne.s32.totalorder %s72, %s73
      %p82 = scmp.eq.s32.totalorder %s20, 0
      %p83 = por %p81, %p82
      %p84 = scmp.ne.s32.totalorder %s72, %s73
      %p85 = scmp.eq.s32.totalorder %s21, 1
      %p86 = por %p84, %p85
      %p88 = scmp.ne.s32.totalorder %s73, %s87
      %p89 = scmp.eq.s32.totalorder %s21, 0
      %p90 = por %p88, %p89
      %s91 = ssub.s32 %s15, %s22
      %p92 = scmp.eq.s32.totalorder %s91, 0
      %s94 = sadd.s32 %s93, 1
      %s95 = scalar_select %p92, %s93, %s94
      %p98 = pneg %p92
      %p99 = scmp.eq.s32.totalorder %s15, 1
      %p100 = por %p98, %p99
      %p101 = scmp.ne.s32.totalorder %s93, %s96
      %p102 = scmp.eq.s32.totalorder %s15, 0
      %p103 = por %p101, %p102
      %p104 = scmp.ne.s32.totalorder %s93, %s96
      %p105 = scmp.eq.s32.totalorder %s20, 1
      %p106 = por %p104, %p105
      %p107 = scmp.ne.s32.totalorder %s96, %s97
      %p108 = scmp.eq.s32.totalorder %s20, 0
      %p109 = por %p107, %p108
      %p110 = scmp.ne.s32.totalorder %s96, %s97
      %p111 = scmp.eq.s32.totalorder %s21, 1
      %p112 = por %p110, %p111
      %p114 = scmp.ne.s32.totalorder %s97, %s113
      %p115 = scmp.eq.s32.totalorder %s21, 0
      %p116 = por %p114, %p115
      %p117 = scmp.le.s32.totalorder 1, %s15
      %p118 = scmp.lt.s32.totalorder %s15, 3
      %p119 = pnand %p117, %p118
      %p120 = pneg %p119
      // Predicated region
      $region9: #{tpu_custom_call.1} parent=5 // pred_check
        _
      $region10: #{tpu_custom_call.1} parent=5 // pred_check_branch
        %122 = sbr.rel (%p119) target = $region12
      $region11: #{tpu_custom_call.1} parent=5 // pred_region
        %s123 = ssub.s32 %s15, 1
        // Predicated region
        $region13: #{tpu_custom_call.1} parent=11 // pred_check
          %p124 = pneg %p62
        $region14: #{tpu_custom_call.1} parent=11 // pred_check_branch
          %126 = sbr.rel (%p124) target = $region16
        $region15: #{tpu_custom_call.1} parent=11 // pred_region
          _
        $region16: #{tpu_custom_call.1} parent=11 // pred_fallthru
          _
        // Predicated region
        $region17: #{tpu_custom_call.1} parent=11 // pred_check
          %p127 = pneg %p83
        $region18: #{tpu_custom_call.1} parent=11 // pred_check_branch
          %129 = sbr.rel (%p127) target = $region20
        $region19: #{tpu_custom_call.1} parent=11 // pred_region
          _
        $region20: #{tpu_custom_call.1} parent=11 // pred_fallthru
          _
      $region12: #{tpu_custom_call.1} parent=5 // pred_fallthru
        _
      %p130 = scmp.lt.s32.totalorder %s15, 2
      // Predicated region
      $region21: #{tpu_custom_call.1} parent=5 // pred_check
        %p131 = pneg %p130
      $region22: #{tpu_custom_call.1} parent=5 // pred_check_branch
        %133 = sbr.rel (%p131) target = $region24
      $region23: #{tpu_custom_call.1} parent=5 // pred_region
        // Predicated region
        $region25: #{tpu_custom_call.1} parent=23 // pred_check
          %p134 = pneg %p35
        $region26: #{tpu_custom_call.1} parent=23 // pred_check_branch
          %136 = sbr.rel (%p134) target = $region28
        $region27: #{tpu_custom_call.1} parent=23 // pred_region
          %s137 = sand.u32 %s25, 1
          %s138 = scalar_lea.sflag [#allocation3], %s137
          %s139 = sand.u32 %s25, 1
          %s140 = smul.addr %s139, 16
          %s141 = scalar_lea.vmem [#allocation2], %s140
          %s143 = ssub.s32 256, 256
          %144 = vsyncadd %s138, %s143
          %s145 = smul.addr %s15, 2
          %s146 = smul.addr %s145, 128
          %s147 = scalar_lea.hbm %s0, %s146
          %s148 = sshll.u32 %s141, 4
          %s149 = int_to_ptr.vmem [resolvable:$true] %s148
          %154 = dma.hbm_to_vmem [thread:$0]  %s147, 256, %s149, %s138, 128, 128, 8
        $region28: #{tpu_custom_call.1} parent=23 // pred_fallthru
          _
      $region24: #{tpu_custom_call.1} parent=5 // pred_fallthru
        _
      %p155 = scmp.le.s32.totalorder 1, %s15
      %p156 = scmp.lt.s32.totalorder %s15, 3
      %p157 = pnand %p155, %p156
      %p158 = pneg %p157
      // Predicated region
      $region29: #{tpu_custom_call.1} parent=5 // pred_check
        _
      $region30: #{tpu_custom_call.1} parent=5 // pred_check_branch
        %160 = sbr.rel (%p157) target = $region32
      $region31: #{tpu_custom_call.1} parent=5 // pred_region
        %s161 = ssub.s32 %s15, 1
        %s162 = sand.u32 %s28, 1
        %s163 = scalar_lea.sflag [#allocation3], %s162
        %s164 = sand.u32 %s28, 1
        %s165 = smul.addr %s164, 16
        %s166 = scalar_lea.vmem [#allocation2], %s165
        // Predicated region
        $region33: #{tpu_custom_call.1} parent=31 // pred_check
          %p167 = pneg %p41
        $region34: #{tpu_custom_call.1} parent=31 // pred_check_branch
          %169 = sbr.rel (%p167) target = $region36
        $region35: #{tpu_custom_call.1} parent=31 // pred_region
          %170 = dma.done %s163, 256
        $region36: #{tpu_custom_call.1} parent=31 // pred_fallthru
          _
        %s171 = sand.u32 %s28, 1
        %s172 = scalar_lea.sflag [#allocation3], %s171
        %s173 = sand.u32 %s28, 1
        %s174 = smul.addr %s173, 16
        %s175 = scalar_lea.vmem [#allocation2], %s174
        %p176 = pneg %p41
        %p177 = pneg %p38
        %p178 = pneg %p62
        %p179 = pneg %p59
        %p180 = pneg %p83
        %p181 = pneg %p80
        %p182 = pneg %p109
        %p183 = pneg %p106
        %s184 = sand.u32 %s96, 1
        %s185 = scalar_lea.sflag [#allocation4], %s184
        %s186 = sand.u32 %s96, 1
        %s187 = smul.addr %s186, 16
        %s188 = scalar_lea.vmem [#allocation5], %s187
        %v189 = vld [vmem:[%s166] sm:$0xff]
        %v190 = vld [vmem:[%s166 + $0x8] sm:$0xff]
        %191 = vadd.xlane.f32.xlu0 %v189
        %v192 = vpop.xlane.xlu0 %191
        %193 = vadd.xlane.f32.xlu0 %v190
        %v194 = vpop.xlane.xlu0 %193
        %v195 = vmul.f32 %v192, 0.0078125
        %v196 = vmul.f32 %v194, 0.0078125
        %v197 = vld [vmem:[%s1] sm:$0xff]
        %v198 = vld [vmem:[%s1 + $0x8] sm:$0xff]
        %v201 = vlaneseq
        %v202 = vand.u32 %v201, 127
        %v203 = vlaneseq
        %v204 = vshrl.u32 %v203, 7
        %v205 = vsub.s32 %v202, %v204
        %v206 = vrot.slane %v195, %v205
        %v207 = vadd.s32 %v202, 4294967288
        %v208 = vlaneseq
        %v209 = vshrl.u32 %v208, 7
        %v210 = vsub.s32 %v207, %v209
        %v211 = vrot.slane %v196, %v210
        %vm212 = vcmask 130112
        %v213 = vsel %vm212, %v211, %v206
        %vm214 = vcmask 130048
        %v215 = vsel %vm214, %v213, 0
        %217 = vmatprep.subr.mxu0 0.0
        %218 = vmatpush1.msra.mxu0 %v197
        %219 = vmatprep.subr.mxu0 0.0
        %220 = vmatpush1.msra.mxu0 %v198
        %221 = vmatprep.subr.mxu0 0.0
        %222 = vmatpush1.msra.mxu0 0.0
        %223 = vmatprep.subr.mxu0 0.0
        %224 = vmatpush1.msra.mxu0 0.0
        %225 = vmatprep.subr.mxu0 0.0
        %226 = vmatpush1.msra.mxu0 0.0
        %227 = vmatprep.subr.mxu0 0.0
        %228 = vmatpush1.msra.mxu0 0.0
        %229 = vmatprep.subr.mxu0 0.0
        %230 = vmatpush1.msra.mxu0 0.0
        %231 = vmatprep.subr.mxu0 0.0
        %232 = vmatpush1.msra.mxu0 0.0
        %233 = vmatprep.subr.mxu0 0.0
        %234 = vmatpush1.msra.mxu0 0.0
        %235 = vmatprep.subr.mxu0 0.0
        %236 = vmatpush1.msra.mxu0 0.0
        %237 = vmatprep.subr.mxu0 0.0
        %238 = vmatpush1.msra.mxu0 0.0
        %239 = vmatprep.subr.mxu0 0.0
        %240 = vmatpush1.msra.mxu0 0.0
        %241 = vmatprep.subr.mxu0 0.0
        %242 = vmatpush1.msra.mxu0 0.0
        %243 = vmatprep.subr.mxu0 0.0
        %244 = vmatpush1.msra.mxu0 0.0
        %245 = vmatprep.subr.mxu0 0.0
        %246 = vmatpush1.msra.mxu0 0.0
        %247 = vmatprep.subr.mxu0 0.0
        %248 = vmatpush1.msra.mxu0 0.0
        %249 = vmatprep.subr.mxu0 0.0
        %250 = vmatpush1.msra.mxu0 0.0
        %251 = vmatprep.subr.mxu0 0.0
        %252 = vmatpush1.msra.mxu0 0.0
        %253 = vmatprep.subr.mxu0 0.0
        %254 = vmatpush1.msra.mxu0 0.0
        %255 = vmatprep.subr.mxu0 0.0
        %256 = vmatpush1.msra.mxu0 0.0
        %257 = vmatprep.subr.mxu0 0.0
        %258 = vmatpush1.msra.mxu0 0.0
        %259 = vmatprep.subr.mxu0 0.0
        %260 = vmatpush1.msra.mxu0 0.0
        %261 = vmatprep.subr.mxu0 0.0
        %262 = vmatpush1.msra.mxu0 0.0
        %263 = vmatprep.subr.mxu0 0.0
        %264 = vmatpush1.msra.mxu0 0.0
        %265 = vmatprep.subr.mxu0 0.0
        %266 = vmatpush1.msra.mxu0 0.0
        %267 = vmatprep.subr.mxu0 0.0
        %268 = vmatpush1.msra.mxu0 0.0
        %269 = vmatprep.subr.mxu0 0.0
        %270 = vmatpush1.msra.mxu0 0.0
        %271 = vmatprep.subr.mxu0 0.0
        %272 = vmatpush1.msra.mxu0 0.0
        %273 = vmatprep.subr.mxu0 0.0
        %274 = vmatpush1.msra.mxu0 0.0
        %275 = vmatprep.subr.mxu0 0.0
        %276 = vmatpush1.msra.mxu0 0.0
        %277 = vmatprep.subr.mxu0 0.0
        %278 = vmatpush1.msra.mxu0 0.0
        %279 = vmatprep.subr.mxu0 0.0
        %280 = vmatpush1.msra.mxu0 0.0
        %281 = vmatprep.mubr.f32.mxu0 0.0
        %282 = vmatmul.mubr.f32.gmra.mrb[0].mxu0 %v215
        %v283 = vpop.f32.mrb[0].mxu0
        %v284 = vadd.f32 0.0, %v283
        %v285 = vpop.f32.mrb[0].mxu0
        %286 = vdwg.mxu0
        %v287 = vmax.f32 %v284, 0.0
        %v288 = vld [vmem:[%s2] sm:$0xf]
        %vm289 = vcmask 31744
        %v291 = vsel %vm289, %v287, 0
        %vm293 = vcmask 1043456
        %v295 = vsel %vm293, %v288, 0
        %297 = vmatprep.subr.mxu0 0.0
        %298 = vmatpush1.msra.mxu0 %v295
        %299 = vmatprep.subr.mxu0 0.0
        %300 = vmatpush1.msra.mxu0 0.0
        %301 = vmatprep.subr.mxu0 0.0
        %302 = vmatpush1.msra.mxu0 0.0
        %303 = vmatprep.subr.mxu0 0.0
        %304 = vmatpush1.msra.mxu0 0.0
        %305 = vmatprep.subr.mxu0 0.0
        %306 = vmatpush1.msra.mxu0 0.0
        %307 = vmatprep.subr.mxu0 0.0
        %308 = vmatpush1.msra.mxu0 0.0
        %309 = vmatprep.subr.mxu0 0.0
        %310 = vmatpush1.msra.mxu0 0.0
        %311 = vmatprep.subr.mxu0 0.0
        %312 = vmatpush1.msra.mxu0 0.0
        %313 = vmatprep.subr.mxu0 0.0
        %314 = vmatpush1.msra.mxu0 0.0
        %315 = vmatprep.subr.mxu0 0.0
        %316 = vmatpush1.msra.mxu0 0.0
        %317 = vmatprep.subr.mxu0 0.0
        %318 = vmatpush1.msra.mxu0 0.0
        %319 = vmatprep.subr.mxu0 0.0
        %320 = vmatpush1.msra.mxu0 0.0
        %321 = vmatprep.subr.mxu0 0.0
        %322 = vmatpush1.msra.mxu0 0.0
        %323 = vmatprep.subr.mxu0 0.0
        %324 = vmatpush1.msra.mxu0 0.0
        %325 = vmatprep.subr.mxu0 0.0
        %326 = vmatpush1.msra.mxu0 0.0
        %327 = vmatprep.subr.mxu0 0.0
        %328 = vmatpush1.msra.mxu0 0.0
        %329 = vmatprep.subr.mxu0 0.0
        %330 = vmatpush1.msra.mxu0 0.0
        %331 = vmatprep.subr.mxu0 0.0
        %332 = vmatpush1.msra.mxu0 0.0
        %333 = vmatprep.subr.mxu0 0.0
        %334 = vmatpush1.msra.mxu0 0.0
        %335 = vmatprep.subr.mxu0 0.0
        %336 = vmatpush1.msra.mxu0 0.0
        %337 = vmatprep.subr.mxu0 0.0
        %338 = vmatpush1.msra.mxu0 0.0
        %339 = vmatprep.subr.mxu0 0.0
        %340 = vmatpush1.msra.mxu0 0.0
        %341 = vmatprep.subr.mxu0 0.0
        %342 = vmatpush1.msra.mxu0 0.0
        %343 = vmatprep.subr.mxu0 0.0
        %344 = vmatpush1.msra.mxu0 0.0
        %345 = vmatprep.subr.mxu0 0.0
        %346 = vmatpush1.msra.mxu0 0.0
        %347 = vmatprep.subr.mxu0 0.0
        %348 = vmatpush1.msra.mxu0 0.0
        %349 = vmatprep.subr.mxu0 0.0
        %350 = vmatpush1.msra.mxu0 0.0
        %351 = vmatprep.subr.mxu0 0.0
        %352 = vmatpush1.msra.mxu0 0.0
        %353 = vmatprep.subr.mxu0 0.0
        %354 = vmatpush1.msra.mxu0 0.0
        %355 = vmatprep.subr.mxu0 0.0
        %356 = vmatpush1.msra.mxu0 0.0
        %357 = vmatprep.subr.mxu0 0.0
        %358 = vmatpush1.msra.mxu0 0.0
        %359 = vmatprep.subr.mxu0 0.0
        %360 = vmatpush1.msra.mxu0 0.0
        %361 = vmatprep.mubr.f32.mxu0 0.0
        %362 = vmatmul.mubr.f32.gmra.mrb[0].mxu0 %v291
        %v363 = vpop.f32.mrb[0].mxu0
        %v364 = vadd.f32 0.0, %v363
        %v365 = vpop.f32.mrb[0].mxu0
        %366 = vdwg.mxu0
        %v367 = vxor.u32 %v364, 2147483648
        %v368 = vmul.f32 %v367, 1.442695
        %v369 = vpow.pop %v368
        %v370 = vadd.f32 %v369, 1.0
        %v371 = vrcp.pop %v370
        %v372 = vmul.f32 1.0, %v371
        %v373 = vadd.f32 %v372, 1.0
        %v374 = vlaneseq
        %v375 = vshrl.u32 %v374, 7
        %v376 = vsub.s32 0, %v375
        %v377 = vrot.slane %v373, %v376
        %379 = vbcast.lane.b32.xlu0 %v377, 256
        %v380 = vpop.permute.xlu0 %379
        %s382 = sor.u32 256, 8
        %383 = vbcast.lane.b32.xlu0 %v377, %s382
        %v384 = vpop.permute.xlu0 %383
        %v385 = vmul.f32 %v189, %v380
        %v386 = vmul.f32 %v190, %v384
        %387 = vst [vmem:[%s188] sm:$0xff] %v385
        %388 = vst [vmem:[%s188 + $0x8] sm:$0xff] %v386
        %s389 = sand.u32 %s96, 1
        %s390 = scalar_lea.sflag [#allocation4], %s389
        %s391 = sand.u32 %s96, 1
        %s392 = smul.addr %s391, 16
        %s393 = scalar_lea.vmem [#allocation5], %s392
        // Predicated region
        $region37: #{tpu_custom_call.1} parent=31 // pred_check
          %p394 = pneg %p106
        $region38: #{tpu_custom_call.1} parent=31 // pred_check_branch
          %396 = sbr.rel (%p394) target = $region40
        $region39: #{tpu_custom_call.1} parent=31 // pred_region
          %s398 = ssub.s32 256, 256
          %399 = vsyncadd %s390, %s398
          %s400 = smul.addr %s20, 2
          %s401 = smul.addr %s400, 128
          %s402 = scalar_lea.hbm %s3, %s401
          %s403 = sshll.u32 %s393, 4
          %s404 = int_to_ptr.vmem [resolvable:$true] %s403
          %409 = dma.vmem_to_hbm [thread:$0]  %s404, 256, %s402, %s390, 128, 128, 8
        $region40: #{tpu_custom_call.1} parent=31 // pred_fallthru
          _
      $region32: #{tpu_custom_call.1} parent=5 // pred_fallthru
        _
      %p410 = scmp.le.s32.totalorder 2, %s15
      // Predicated region
      $region41: #{tpu_custom_call.1} parent=5 // pred_check
        %p411 = pneg %p410
      $region42: #{tpu_custom_call.1} parent=5 // pred_check_branch
        %413 = sbr.rel (%p411) target = $region44
      $region43: #{tpu_custom_call.1} parent=5 // pred_region
        %s414 = ssub.s32 %s15, 2
        // Predicated region
        $region45: #{tpu_custom_call.1} parent=43 // pred_check
          %p415 = pneg %p112
        $region46: #{tpu_custom_call.1} parent=43 // pred_check_branch
          %417 = sbr.rel (%p415) target = $region48
        $region47: #{tpu_custom_call.1} parent=43 // pred_region
          %s418 = sand.u32 %s97, 1
          %s419 = scalar_lea.sflag [#allocation4], %s418
          %s420 = sand.u32 %s97, 1
          %s421 = smul.addr %s420, 16
          %s422 = scalar_lea.vmem [#allocation5], %s421
          %423 = dma.done %s419, 256
        $region48: #{tpu_custom_call.1} parent=43 // pred_fallthru
          _
      $region44: #{tpu_custom_call.1} parent=5 // pred_fallthru
        _
    $region6: #{tpu_custom_call.1} parent=1 // loop_footer
      %s19 = sadd.s32 1, %s15
    $region7: #{tpu_custom_call.1} parent=1 // loop_footer_branch
      %14 = sbr.rel target = $region3
    $region8: #{tpu_custom_call.1} parent=1 // loop_exit
      _
    %424 = vsyncpa [#allocation3], 1
    %s425 = scalar_lea.sflag [#allocation3], 1
    %426 = vsyncpa %s425, 1
    %427 = vsyncpa [#allocation4], 1
    %s428 = scalar_lea.sflag [#allocation4], 1
    %429 = vsyncpa %s428, 1

</llo_original>
